<compile_context>
chip_gen: v7x
topology: tpu7x:2x2x1
jax: 0.10.0
libtpu: 0.0.40
codegen_flags: <defaults>
</compile_context>

<pallas_src>
import functools

import jax
import jax.numpy as jnp
from jax.experimental import pallas as pl
from jax.experimental.pallas import tpu as pltpu


def _avgmax_kernel(x_ref, o_ref, sum_acc, max_acc, *, hw, hw_tile, inv_hw):
    """Grid = (row_blocks, hw_blocks); hw (reduction) axis is innermost."""
    k = pl.program_id(1)

    @pl.when(k == 0)
    def _init():
        sum_acc[...] = jnp.zeros_like(sum_acc)
        max_acc[...] = jnp.full_like(max_acc, -jnp.inf)

    x_nat = x_ref[...]                     # native dtype -> max path
    x_f32 = x_nat.astype(jnp.float32)      # f32 upcast   -> sum path

    if hw % hw_tile != 0:
        # Ragged final HW tile: mask padded (garbage) lanes so they don't
        # contaminate the running sum / max of real rows.
        base = k * hw_tile
        idx = base + jax.lax.broadcasted_iota(jnp.int32, x_nat.shape, 1)
        valid = idx < hw
        x_f32 = jnp.where(valid, x_f32, 0.0)
        x_nat = jnp.where(valid, x_nat, -jnp.inf)

    sum_acc[...] += jnp.sum(x_f32, axis=-1, keepdims=True)
    max_acc[...] = jnp.maximum(
        max_acc[...],
        jnp.max(x_nat, axis=-1, keepdims=True).astype(jnp.float32),
    )

    @pl.when(k == pl.num_programs(1) - 1)
    def _finalize():
        # mean + max, cast back to the output dtype, written once per row block.
        o_ref[...] = (sum_acc[...] * inv_hw + max_acc[...]).astype(o_ref.dtype)


def _round_up(a, b):
    return ((a + b - 1) // b) * b


def adaptive_avg_max_pool2d(x, *, hw_tile_max=2048,
                            bytes_per_input_buffer=6 * 1024 * 1024):
    """Equivalent of:
        x_avg = x.view(N, C, -1).mean(-1).view(N, C, 1, 1)
        x_max = F.adaptive_max_pool2d(x, 1)
        return x_max + x_avg
    Input:  x of shape (N, C, H, W)
    Output: shape (N, C, 1, 1), same dtype as x.
    """
    N, C, H, W = x.shape
    rows = N * C
    hw = H * W
    x2d = x.reshape(rows, hw)

    itemsize = jnp.dtype(x.dtype).itemsize
    # sublane packing: 8 rows for 4-byte, 16 for 2-byte, 32 for 1-byte dtypes.
    sublane_mult = max(8, 32 // itemsize)

    # ---- HW (lane / reduction) tiling ----
    if hw <= hw_tile_max:
        hw_tile = hw                      # full extent: legal even if not %128
    else:
        hw_tile = hw_tile_max             # multiple of 128
    num_hw_blocks = pl.cdiv(hw, hw_tile)

    # ---- Row (sublane / parallel) tiling: as large as the VMEM budget allows.
    # Budget keeps double-buffered input <= ~12 MiB so it fits every generation
    # (v5e 16 MiB default scoped, v7x 64 MiB physical) while saturating HBM BW.
    row_cap = bytes_per_input_buffer // (hw_tile * itemsize)
    row_cap = max(sublane_mult, (row_cap // sublane_mult) * sublane_mult)
    row_cap = min(row_cap, 4096)          # keep >=2 blocks on realistic shapes (v7x megacore)
    row_tile = min(row_cap, _round_up(rows, sublane_mult))
    num_row_blocks = pl.cdiv(rows, row_tile)

    kernel = functools.partial(
        _avgmax_kernel, hw=hw, hw_tile=hw_tile, inv_hw=1.0 / hw)

    out = pl.pallas_call(
        kernel,
        out_shape=jax.ShapeDtypeStruct((rows, 1), x.dtype),
        grid_spec=pltpu.PrefetchScalarGridSpec(
            num_scalar_prefetch=0,
            grid=(num_row_blocks, num_hw_blocks),
            in_specs=[pl.BlockSpec((row_tile, hw_tile), lambda i, k: (i, k))],
            out_specs=pl.BlockSpec((row_tile, 1), lambda i, k: (i, 0)),
            scratch_shapes=[
                pltpu.VMEM((row_tile, 1), jnp.float32),   # running sum
                pltpu.VMEM((row_tile, 1), jnp.float32),   # running max
            ],
        ),
        compiler_params=pltpu.CompilerParams(
            dimension_semantics=("parallel", "arbitrary"),
            vmem_limit_bytes=48 * 1024 * 1024,
        ),
    )(x2d)

    return out.reshape(N, C, 1, 1)


def _reference(x):
    N, C, H, W = x.shape
    xf = x.reshape(N, C, -1)
    x_avg = xf.mean(-1).reshape(N, C, 1, 1)
    x_max = xf.max(-1).reshape(N, C, 1, 1)
    return x_max + x_avg


if __name__ == "__main__":
    key = jax.random.PRNGKey(0)

    # Primary small test (NCHW), matching the module's typical usage.
    x = jax.random.normal(key, (2, 4, 16, 16), dtype=jnp.float32)
    out = jax.block_until_ready(adaptive_avg_max_pool2d(x))
    ref = _reference(x)
    assert out.shape == (2, 4, 1, 1), out.shape
    assert jnp.allclose(out, ref, atol=1e-5, rtol=1e-5), (out, ref)

    # Extra check exercising the tiled-HW + ragged-lane-mask path (hw=2304 > 2048).
    x2 = jax.random.normal(jax.random.PRNGKey(0), (2, 8, 48, 48), dtype=jnp.float32)
    out2 = jax.block_until_ready(adaptive_avg_max_pool2d(x2))
    ref2 = _reference(x2)
    assert out2.shape == (2, 8, 1, 1), out2.shape
    assert jnp.allclose(out2, ref2, atol=1e-5, rtol=1e-5)

    print("KERNEL_OK")
</pallas_src>

<mosaic_0001>
module attributes {stable_mosaic.version = 11 : i64} {
  func.func @_avgmax_kernel(%arg0: i32, %arg1: i32, %arg2: memref<8x256xf32, #tpu.memory_space<vmem>>, %arg3: memref<8x1xf32, #tpu.memory_space<vmem>>, %arg4: memref<8x1xf32, #tpu.memory_space<vmem>>, %arg5: memref<8x1xf32, #tpu.memory_space<vmem>>) attributes {dimension_semantics = [#tpu.dimension_semantics<parallel>, #tpu.dimension_semantics<arbitrary>], iteration_bounds = array<i64: 1, 1>, scalar_prefetch = 0 : i64, scratch_operands = 2 : i64, tpu.core_type = #tpu.core_type<tc>, window_params = [{transform_indices = @transform_0, window_bounds = array<i64: 8, 256>}, {transform_indices = @transform_1, window_bounds = array<i64: 8, 1>}]} {
    %c0_i32 = arith.constant 0 : i32
    %0 = arith.cmpi eq, %arg1, %c0_i32 : i32
    %1 = arith.extui %0 : i1 to i32
    %c0_i32_0 = arith.constant 0 : i32
    %2 = arith.cmpi ne, %1, %c0_i32_0 : i32
    scf.if %2 {
      %cst_13 = arith.constant 0.000000e+00 : f32
      %17 = vector.broadcast %cst_13 : f32 to vector<8x1xf32>
      %c0_14 = arith.constant 0 : index
      %c0_15 = arith.constant 0 : index
      %18 = vector.load %arg4[%c0_14, %c0_15] : memref<8x1xf32, #tpu.memory_space<vmem>>, vector<8x1xf32>
      tpu.vector_store %arg4[%c0_14, %c0_15], %17 {strides = array<i32>} : memref<8x1xf32, #tpu.memory_space<vmem>>, vector<8x1xf32>,
      %cst_16 = arith.constant 0xFF800000 : f32
      %19 = vector.broadcast %cst_16 : f32 to vector<8x1xf32>
      %c0_17 = arith.constant 0 : index
      %c0_18 = arith.constant 0 : index
      %20 = vector.load %arg5[%c0_17, %c0_18] : memref<8x1xf32, #tpu.memory_space<vmem>>, vector<8x1xf32>
      tpu.vector_store %arg5[%c0_17, %c0_18], %19 {strides = array<i32>} : memref<8x1xf32, #tpu.memory_space<vmem>>, vector<8x1xf32>,
    } else {
    }
    %c0 = arith.constant 0 : index
    %c0_1 = arith.constant 0 : index
    %3 = vector.load %arg2[%c0, %c0_1] : memref<8x256xf32, #tpu.memory_space<vmem>>, vector<8x256xf32>
    %c0_2 = arith.constant 0 : index
    %c0_3 = arith.constant 0 : index
    %4 = vector.load %arg4[%c0_2, %c0_3] : memref<8x1xf32, #tpu.memory_space<vmem>>, vector<8x1xf32>
    %cst = arith.constant dense<0.000000e+00> : vector<8xf32>
    %5 = vector.multi_reduction <add>, %3, %cst [1] : vector<8x256xf32> to vector<8xf32>
    %6 = vector.shape_cast %5 : vector<8xf32> to vector<8x1xf32>
    %7 = arith.addf %4, %6 : vector<8x1xf32>
    %c0_4 = arith.constant 0 : index
    %c0_5 = arith.constant 0 : index
    %8 = vector.load %arg4[%c0_4, %c0_5] : memref<8x1xf32, #tpu.memory_space<vmem>>, vector<8x1xf32>
    tpu.vector_store %arg4[%c0_4, %c0_5], %7 {strides = array<i32>} : memref<8x1xf32, #tpu.memory_space<vmem>>, vector<8x1xf32>,
    %c0_6 = arith.constant 0 : index
    %c0_7 = arith.constant 0 : index
    %9 = vector.load %arg5[%c0_6, %c0_7] : memref<8x1xf32, #tpu.memory_space<vmem>>, vector<8x1xf32>
    %cst_8 = arith.constant dense<0xFF800000> : vector<8xf32>
    %10 = vector.multi_reduction <maximumf>, %3, %cst_8 [1] : vector<8x256xf32> to vector<8xf32>
    %11 = vector.shape_cast %10 : vector<8xf32> to vector<8x1xf32>
    %12 = arith.maximumf %9, %11 : vector<8x1xf32>
    %c0_9 = arith.constant 0 : index
    %c0_10 = arith.constant 0 : index
    %13 = vector.load %arg5[%c0_9, %c0_10] : memref<8x1xf32, #tpu.memory_space<vmem>>, vector<8x1xf32>
    tpu.vector_store %arg5[%c0_9, %c0_10], %12 {strides = array<i32>} : memref<8x1xf32, #tpu.memory_space<vmem>>, vector<8x1xf32>,
    %c0_i32_11 = arith.constant 0 : i32
    %14 = arith.cmpi eq, %arg1, %c0_i32_11 : i32
    %15 = arith.extui %14 : i1 to i32
    %c0_i32_12 = arith.constant 0 : i32
    %16 = arith.cmpi ne, %15, %c0_i32_12 : i32
    scf.if %16 {
      %c0_13 = arith.constant 0 : index
      %c0_14 = arith.constant 0 : index
      %17 = vector.load %arg4[%c0_13, %c0_14] : memref<8x1xf32, #tpu.memory_space<vmem>>, vector<8x1xf32>
      %cst_15 = arith.constant 3.906250e-03 : f32
      %18 = vector.broadcast %cst_15 : f32 to vector<8x1xf32>
      %19 = arith.mulf %17, %18 : vector<8x1xf32>
      %c0_16 = arith.constant 0 : index
      %c0_17 = arith.constant 0 : index
      %20 = vector.load %arg5[%c0_16, %c0_17] : memref<8x1xf32, #tpu.memory_space<vmem>>, vector<8x1xf32>
      %21 = arith.addf %19, %20 : vector<8x1xf32>
      %c0_18 = arith.constant 0 : index
      %c0_19 = arith.constant 0 : index
      %22 = vector.load %arg3[%c0_18, %c0_19] : memref<8x1xf32, #tpu.memory_space<vmem>>, vector<8x1xf32>
      tpu.vector_store %arg3[%c0_18, %c0_19], %21 {strides = array<i32>} : memref<8x1xf32, #tpu.memory_space<vmem>>, vector<8x1xf32>,
    } else {
    }
    return
  }
  func.func @transform_0(%arg0: i32, %arg1: i32) -> (i32, i32) {
    %c0_i32 = arith.constant 0 : i32
    return %arg0, %arg1 : i32, i32
  }
  func.func @transform_1(%arg0: i32, %arg1: i32) -> (i32, i32) {
    %c0_i32 = arith.constant 0 : i32
    %c0_i32_0 = arith.constant 0 : i32
    return %arg0, %c0_i32 : i32, i32
  }
}

</mosaic_0001>

<llo_original>
// kernel: tpu_custom_call.1
$region0: #{tpu_custom_call.1}
  #allocation0 [shape = 'u32[]', space=smem, size = 0x4, offset = 0x4, fixed_abs, tag = 'smem constant byte address 0x4 - core index']
  #allocation1 [shape = 'u32[144,128]{1,0:T(1,128)}', space=vmem, size = 0x12000, scoped, tag = 'internal scratch']
  #allocation2 [shape = 'f32[8,1]{1,0:T(8,128)}', space=vmem, size = 0x1000, scoped, tag = 'scratch operand']
  #allocation3 [shape = 'f32[8,1]{1,0:T(8,128)}', space=vmem, size = 0x1000, scoped, tag = 'scratch operand']
  %s0 = inlined_call_operand.hbm [shape: f32[8,256], index: 0, kind: input, shape index: {}]
  %s1 = inlined_call_operand.vmem [shape: f32[8,1], index: 1, kind: output, shape index: {}]
  %s2 = sld [smem:[#allocation0]]
  $region26: #{tpu_custom_call.1} parent=0
    _
  %s4 = ssub.s32 1, %s2
  %s5 = scalar_select 0, %s4, %s2
  $region1: #{tpu_custom_call.1} parent=0
    #allocation4 [shape = 'u8[8192]{0}', space=vmem, size = 0x2000, scoped, tag = 'input window, operand 0, single buffered']
    #allocation5 [shape = 's32[1]{0}', space=sflag, size = 0x4, scoped, tag = 'scoped memory for tpu_custom_call.1']
    %6 = vsyncpa [#allocation5], 0
    // Predicated region
    $region2: #{tpu_custom_call.1} parent=1 // pred_check
      _
    $region3: #{tpu_custom_call.1} parent=1 // pred_check_branch
      %8 = sbr.rel (0) target = $region5
    $region4: #{tpu_custom_call.1} parent=1 // pred_region
      %s10 = ssub.s32 256, 256
      %11 = vsyncadd [#allocation5], %s10
      %s13 = sshll.u32 [#allocation4], 4
      %s14 = int_to_ptr.vmem [resolvable:$true] %s13
      %16 = dma.hbm_to_vmem [thread:$0]  %s0, 256, %s14, [#allocation5]
    $region5: #{tpu_custom_call.1} parent=1 // pred_fallthru
      _
    // Predicated region
    $region6: #{tpu_custom_call.1} parent=1 // pred_check
      _
    $region7: #{tpu_custom_call.1} parent=1 // pred_check_branch
      %18 = sbr.rel (0) target = $region9
    $region8: #{tpu_custom_call.1} parent=1 // pred_region
      %19 = dma.done [#allocation5], 256
    $region9: #{tpu_custom_call.1} parent=1 // pred_fallthru
      _
    %p20 = scmp.eq.s32.totalorder 0, 0
    // Predicated region
    $region10: #{tpu_custom_call.1} parent=1 // pred_check
      %p21 = pneg %p20
    $region11: #{tpu_custom_call.1} parent=1 // pred_check_branch
      %23 = sbr.rel (%p21) target = $region13
    $region12: #{tpu_custom_call.1} parent=1 // pred_region
      %vm24 = vcmask 7168
      %25 = vst.msk [vmem:[#allocation2] sm:$0xff] %vm24, 0.0
      %26 = vst.msk [vmem:[#allocation3] sm:$0xff] %vm24, -inf
    $region13: #{tpu_custom_call.1} parent=1 // pred_fallthru
      _
    %v27 = vld [vmem:[#allocation4] sm:$0xff]
    %v28 = vld [vmem:[#allocation4 + $0x8] sm:$0xff]
    %v29 = vld [vmem:[#allocation2] sm:$0xff]
    %v30 = vadd.f32 %v27, %v28
    %31 = vadd.xlane.f32.xlu0 %v30
    %v32 = vpop.xlane.xlu0 %31
    %v33 = vadd.f32 %v29, %v32
    %vm34 = vcmask 7168
    %35 = vst.msk [vmem:[#allocation2] sm:$0xff] %vm34, %v33
    %v36 = vld [vmem:[#allocation3] sm:$0xff]
    %v37 = vmax.f32 %v27, %v28
    %38 = vmax.xlane.f32.xlu0 %v37
    %v39 = vpop.xlane.xlu0 %38
    %v40 = vmax.f32 %v36, %v39
    %41 = vst.msk [vmem:[#allocation3] sm:$0xff] %vm34, %v40
    // Predicated region
    $region14: #{tpu_custom_call.1} parent=1 // pred_check
      %p42 = pneg %p20
    $region15: #{tpu_custom_call.1} parent=1 // pred_check_branch
      %44 = sbr.rel (%p42) target = $region17
    $region16: #{tpu_custom_call.1} parent=1 // pred_region
      %v45 = vld [vmem:[#allocation2] sm:$0xff]
      %v46 = vmul.f32 %v45, 0.00390625
      %v47 = vld [vmem:[#allocation3] sm:$0xff]
      %v48 = vadd.f32 %v46, %v47
      %49 = vst.msk [vmem:[%s1] sm:$0xff] %vm34, %v48
    $region17: #{tpu_custom_call.1} parent=1 // pred_fallthru
      _
    // Predicated region
    $region18: #{tpu_custom_call.1} parent=1 // pred_check
      _
    $region19: #{tpu_custom_call.1} parent=1 // pred_check_branch
      %51 = sbr.rel (0) target = $region21
    $region20: #{tpu_custom_call.1} parent=1 // pred_region
      _
    $region21: #{tpu_custom_call.1} parent=1 // pred_fallthru
      _
    // Predicated region
    $region22: #{tpu_custom_call.1} parent=1 // pred_check
      _
    $region23: #{tpu_custom_call.1} parent=1 // pred_check_branch
      %53 = sbr.rel (0) target = $region25
    $region24: #{tpu_custom_call.1} parent=1 // pred_region
      _
    $region25: #{tpu_custom_call.1} parent=1 // pred_fallthru
      _
    %54 = vsyncpa [#allocation5], 1

</llo_original>
